<compile_context>
chip_gen: v5e
topology: v5e:2x2
jax: 0.10.0
libtpu: 0.0.40
codegen_flags: <defaults>
</compile_context>

<pallas_src>
import functools

import jax
import jax.numpy as jnp
import numpy as np
from jax.experimental import pallas as pl
from jax.experimental.pallas import tpu as pltpu

BN_EPS = 1e-5                 # PyTorch BatchNorm1d default
MATMUL_DTYPE = jnp.bfloat16   # MXU operand dtype (accumulation is always f32)
ROW_TILE = 1024               # rows (B*Lout) per grid step (~85% HBM roofline tile size)
ROW_ALIGN = 32                # row padding granularity (covers f32 (8,) and bf16 (16,) sublane packing)


def _round_up(n, m):
    return (n + m - 1) // m * m


def _row_tiling(rows):
    """(rows_padded, tile_rows, num_tiles) for the row-tiled 1-D grid."""
    rp = _round_up(rows, ROW_ALIGN)
    if rp <= ROW_TILE:
        return rp, rp, 1
    rp = _round_up(rows, ROW_TILE)
    return rp, ROW_TILE, rp // ROW_TILE


# ------------------------------ Pallas kernels ------------------------------

def _make_conv_kernel(with_stats, n_valid_rows, rows_padded):
    """Conv1d row tile as a single (TR, K*Cin) @ (K*Cin, Cout) MXU matmul (+ bias).

    refs = [taps, w, b, y_out, (stats_out)]
      taps  : (TR, K*Cin)  row tile of the im2col tap slab (MATMUL_DTYPE)
      w     : (K*Cin, Cout)
      b     : (1, Cout) f32
      y_out : (TR, Cout) f32   conv output (pre-BN)
      stats : (1, 2, Cout) f32 per-tile partial [sum, sum-of-squares] over valid rows
    """
    mask_rows = with_stats and (rows_padded != n_valid_rows)

    def kernel(taps_ref, w_ref, b_ref, *out_refs):
        if with_stats:
            y_ref, stats_ref = out_refs
        else:
            (y_ref,) = out_refs

        y = jnp.dot(taps_ref[...], w_ref[...],
                    preferred_element_type=jnp.float32) + b_ref[...]
        y_ref[...] = y.astype(y_ref.dtype)

        if with_stats:
            tr = y.shape[0]
            if mask_rows:  # exclude rows that only exist because of row-tile padding
                row0 = pl.program_id(0) * tr
                rid = row0 + jax.lax.broadcasted_iota(jnp.int32, (tr, 1), 0)
                ym = y * (rid < n_valid_rows).astype(jnp.float32)
            else:
                ym = y
            psum = jnp.sum(ym, axis=0, keepdims=True)       # (1, Cout)
            psq = jnp.sum(ym * y, axis=0, keepdims=True)    # (1, Cout)  = sum(y^2 * mask)
            stats_ref[...] = jnp.concatenate([psum, psq], axis=0)[None]

    return kernel


def _make_finalize_kernel(res_mode, relu):
    """Fused BatchNorm affine (+ residual + ReLU) on a row tile.

    res_mode: None | "direct" (residual tile added as-is)
                   | "affine" (residual path's raw 1x1-conv output is BN-normalised
                               in-kernel with its own scale/shift before the add).
    """

    def kernel(*refs):
        y_ref, sc_ref, sh_ref = refs[0], refs[1], refs[2]
        i = 3
        if res_mode == "direct":
            res_ref = refs[i]; i += 1
        elif res_mode == "affine":
            yr_ref, rsc_ref, rsh_ref = refs[i], refs[i + 1], refs[i + 2]; i += 3
        o_ref = refs[i]

        y = y_ref[...] * sc_ref[...] + sh_ref[...]
        if res_mode == "direct":
            y = y + res_ref[...]
        elif res_mode == "affine":
            y = y + (yr_ref[...] * rsc_ref[...] + rsh_ref[...])
        if relu:
            y = jnp.maximum(y, 0.0)
        o_ref[...] = y.astype(o_ref.dtype)

    return kernel


# ------------------------------ layer wrappers ------------------------------

def _im2col(x, K, dilation, stride):
    """x (B, L, Cin) -> tap slab (B, Lout, K*Cin) for a zero-padded dilated conv.

    Layout glue: the pad + K strided slices + concat fuse in XLA into one slab write
    (and fuse with any preceding elementwise producer of x).  Only the strided output
    positions are gathered, so stride > 1 does no wasted work."""
    B, L, Cin = x.shape
    pad = (K - 1) // 2 * dilation
    Lout = (L + 2 * pad - dilation * (K - 1) - 1) // stride + 1
    xp = jnp.pad(x, ((0, 0), (pad, pad), (0, 0)))
    taps = [xp[:, k * dilation:k * dilation + (Lout - 1) * stride + 1:stride, :]
            for k in range(K)]
    return jnp.concatenate(taps, axis=-1), Lout


def _conv_pass(x, w, b, *, dilation, stride, with_stats):
    """Row-tiled Conv1d pass.  Returns (y_rows (Rp, Cout) f32, stats|None, meta)."""
    B, L, Cin = x.shape
    K, _, Cout = w.shape
    taps, Lout = _im2col(x, K, dilation, stride)
    KC = K * Cin
    R = B * Lout
    Rp, TR, ntiles = _row_tiling(R)

    taps = taps.reshape(R, KC)
    if Rp != R:
        taps = jnp.pad(taps, ((0, Rp - R), (0, 0)))
    taps = taps.astype(MATMUL_DTYPE)
    wf = w.reshape(KC, Cout).astype(MATMUL_DTYPE)
    bf = b.reshape(1, Cout).astype(jnp.float32)

    in_specs = [
        pl.BlockSpec((TR, KC), lambda i: (i, 0)),
        pl.BlockSpec((KC, Cout), lambda i: (0, 0)),
        pl.BlockSpec((1, Cout), lambda i: (0, 0)),
    ]
    y_shape = jax.ShapeDtypeStruct((Rp, Cout), jnp.float32)
    y_spec = pl.BlockSpec((TR, Cout), lambda i: (i, 0))

    item = np.dtype(MATMUL_DTYPE).itemsize
    bytes_accessed = Rp * KC * item + KC * Cout * item + Rp * Cout * 4
    if with_stats:
        out_shape = (y_shape, jax.ShapeDtypeStruct((ntiles, 2, Cout), jnp.float32))
        out_specs = (y_spec, pl.BlockSpec((1, 2, Cout), lambda i: (i, 0, 0)))
        bytes_accessed += ntiles * 2 * Cout * 4
    else:
        out_shape = y_shape
        out_specs = y_spec

    outs = pl.pallas_call(
        _make_conv_kernel(with_stats, R, Rp),
        grid=(ntiles,),
        in_specs=in_specs,
        out_specs=out_specs,
        out_shape=out_shape,
        # "parallel" -> row tiles shard across both TensorCores on v7x (no-op on v5e/v6e).
        compiler_params=pltpu.CompilerParams(dimension_semantics=("parallel",)),
        cost_estimate=pl.CostEstimate(
            flops=int(2 * Rp * KC * Cout),
            transcendentals=0,
            bytes_accessed=int(bytes_accessed)),
    )(taps, wf, bf)

    meta = dict(B=B, R=R, Rp=Rp, TR=TR, ntiles=ntiles, Lout=Lout, Cout=Cout)
    if with_stats:
        y, stats = outs
        return y, stats, meta
    return outs, None, meta


def _bn_scale_shift(stats, n_rows, gamma, beta):
    """Fold training-mode BatchNorm1d batch stats into per-channel scale/shift.
    Tiny (ntiles, 2, C) -> (C,) reduction done in plain JAX (negligible bytes)."""
    s = jnp.sum(stats[:, 0, :], axis=0)
    ss = jnp.sum(stats[:, 1, :], axis=0)
    mean = s / n_rows
    var = jnp.maximum(ss / n_rows - mean * mean, 0.0)  # biased variance (PyTorch training BN)
    rstd = jax.lax.rsqrt(var + BN_EPS)
    scale = gamma * rstd
    shift = beta - mean * scale
    return scale, shift


def _finalize(y, scale, shift, meta, *, relu, res=None, res_affine=None):
    """Row-tiled fused BN-affine (+ residual + ReLU)."""
    Rp, TR, ntiles, Cout = meta["Rp"], meta["TR"], meta["ntiles"], meta["Cout"]
    row_spec = pl.BlockSpec((TR, Cout), lambda i: (i, 0))
    vec_spec = pl.BlockSpec((1, Cout), lambda i: (0, 0))

    args = [y, scale.reshape(1, Cout).astype(jnp.float32),
            shift.reshape(1, Cout).astype(jnp.float32)]
    in_specs = [row_spec, vec_spec, vec_spec]
    res_mode = None
    n_big = 2  # y in + out
    if res is not None:
        res_mode = "direct"
        args.append(res.astype(jnp.float32))
        in_specs.append(row_spec)
        n_big += 1
    elif res_affine is not None:
        res_mode = "affine"
        yr, rsc, rsh = res_affine
        args += [yr, rsc.reshape(1, Cout).astype(jnp.float32),
                 rsh.reshape(1, Cout).astype(jnp.float32)]
        in_specs += [row_spec, vec_spec, vec_spec]
        n_big += 1

    return pl.pallas_call(
        _make_finalize_kernel(res_mode, relu),
        grid=(ntiles,),
        in_specs=in_specs,
        out_specs=row_spec,
        out_shape=jax.ShapeDtypeStruct((Rp, Cout), jnp.float32),
        compiler_params=pltpu.CompilerParams(dimension_semantics=("parallel",)),
        cost_estimate=pl.CostEstimate(
            flops=int(4 * Rp * Cout),
            transcendentals=0,
            bytes_accessed=int(n_big * Rp * Cout * 4)),
    )(*args)


def _rows_to_blc(y_rows, meta):
    # layout glue: drop row-tile padding, back to (B, Lout, C)
    return y_rows[:meta["R"]].reshape(meta["B"], meta["Lout"], meta["Cout"])


def _blc_to_rows(x, meta):
    # layout glue: (B, L, C) -> row-padded (Rp, C); shapes must match the conv meta
    # (identity residual is only valid at stride == 1, same as the PyTorch module).
    rows = x.reshape(-1, x.shape[-1])
    if meta["Rp"] != meta["R"]:
        rows = jnp.pad(rows, ((0, meta["Rp"] - meta["R"]), (0, 0)))
    return rows


# --------------------------- module forward passes ---------------------------

def conv1d(x, w, b, *, dilation=1, stride=1):
    """Plain Conv1d (no BN / activation). x (B, L, Cin) -> (B, Lout, Cout)."""
    y, _, meta = _conv_pass(x, w, b, dilation=dilation, stride=stride, with_stats=False)
    return _rows_to_blc(y, meta)


def res_block_forward(x, p, *, stride, dilation):
    """ResBlock: relu(bn2(conv2(relu(bn1(conv1(x))))) + residual)."""
    # conv1 -> BN1 -> ReLU
    y1, st1, m1 = _conv_pass(x, p["conv1"]["w"], p["conv1"]["b"],
                             dilation=dilation, stride=stride, with_stats=True)
    sc1, sh1 = _bn_scale_shift(st1, m1["R"], p["bn1"]["gamma"], p["bn1"]["beta"])
    h = _rows_to_blc(_finalize(y1, sc1, sh1, m1, relu=True), m1)

    # conv2 -> BN2  (affine fused with the residual add + final ReLU in one kernel)
    y2, st2, m2 = _conv_pass(h, p["conv2"]["w"], p["conv2"]["b"],
                             dilation=dilation, stride=stride, with_stats=True)
    sc2, sh2 = _bn_scale_shift(st2, m2["R"], p["bn2"]["gamma"], p["bn2"]["beta"])

    if "res_conv" in p:
        # 1x1 strided conv + BN on the residual path; its BN affine is applied inside
        # the same finalize kernel as conv2's (no extra kernel / HBM round trip).
        yr, str_, mr = _conv_pass(x, p["res_conv"]["w"], p["res_conv"]["b"],
                                  dilation=1, stride=stride, with_stats=True)
        scr, shr = _bn_scale_shift(str_, mr["R"], p["res_bn"]["gamma"], p["res_bn"]["beta"])
        out = _finalize(y2, sc2, sh2, m2, relu=True, res_affine=(yr, scr, shr))
    else:
        out = _finalize(y2, sc2, sh2, m2, relu=True, res=_blc_to_rows(x, m2))
    return _rows_to_blc(out, m2)


def dilated_conv_encoder_forward(x_ncl, params, *, stride, dilations):
    # layout: accepts PyTorch NCL (B, C, L); kernels run channels-last (B, L, C).
    x = jnp.transpose(x_ncl, (0, 2, 1))
    x = conv1d(x, params["in_conv"]["w"], params["in_conv"]["b"], stride=stride)
    for stack in params["stacks"]:
        for blk, dil in zip(stack, dilations):
            x = res_block_forward(x, blk, stride=stride, dilation=dil)
    x = conv1d(x, params["out_conv"]["w"], params["out_conv"]["b"], stride=stride)
    return jnp.transpose(x, (0, 2, 1))  # back to NCL


# ---------------- parameter init (deterministic, synthetic) ----------------

def _init_conv(key, k, cin, cout):
    kw, kb = jax.random.split(key)
    w = jax.random.normal(kw, (k, cin, cout), jnp.float32) / np.sqrt(cin * k)
    b = 0.05 * jax.random.normal(kb, (cout,), jnp.float32)
    return {"w": w, "b": b}


def _init_bn(key, c):
    kg, kb = jax.random.split(key)
    gamma = 1.0 + 0.1 * jax.random.normal(kg, (c,), jnp.float32)
    beta = 0.05 * jax.random.normal(kb, (c,), jnp.float32)
    return {"gamma": gamma, "beta": beta}


def init_res_block(key, num_ins, num_outs, kernel_size, stride):
    keys = jax.random.split(key, 6)
    p = {
        "conv1": _init_conv(keys[0], kernel_size, num_ins, num_outs),
        "bn1": _init_bn(keys[1], num_outs),
        "conv2": _init_conv(keys[2], kernel_size, num_outs, num_outs),
        "bn2": _init_bn(keys[3], num_outs),
    }
    if stride != 1 or num_ins != num_outs:
        p["res_conv"] = _init_conv(keys[4], 1, num_ins, num_outs)
        p["res_bn"] = _init_bn(keys[5], num_outs)
    return p


def init_encoder(key, in_channels, out_channels, kernel_size, stride, dilations, nstacks):
    keys = jax.random.split(key, 2 + nstacks)
    params = {
        "in_conv": _init_conv(keys[0], kernel_size, in_channels, out_channels),
        "out_conv": _init_conv(keys[1], kernel_size, out_channels, out_channels),
        "stacks": [],
    }
    for s in range(nstacks):
        bkeys = jax.random.split(keys[2 + s], len(dilations))
        params["stacks"].append([
            init_res_block(bk, out_channels, out_channels, kernel_size, stride)
            for bk in bkeys
        ])
    return params


if __name__ == "__main__":
    # DilatedConvEncoder(in_channels=4, out_channels=32, kernel_size=3,
    #                    stride=1, dilations=(1, 2), nstacks=2)
    in_channels, out_channels = 4, 32
    kernel_size, stride = 3, 1
    dilations = (1, 2)
    nstacks = 2
    B, L = 2, 16

    root = jax.random.PRNGKey(0)
    kx, kp = jax.random.split(root)
    x = jax.random.normal(kx, (B, in_channels, L), jnp.float32)  # PyTorch NCL input
    params = init_encoder(kp, in_channels, out_channels, kernel_size,
                          stride, dilations, nstacks)

    fwd = jax.jit(functools.partial(dilated_conv_encoder_forward,
                                    stride=stride, dilations=dilations))
    out = jax.block_until_ready(fwd(x, params))
    assert out.shape == (B, out_channels, L), out.shape
    assert bool(jnp.all(jnp.isfinite(out)))
    print("KERNEL_OK")
</pallas_src>

<mosaic_0001>
module attributes {stable_mosaic.version = 11 : i64} {
  func.func @kernel(%arg0: i32, %arg1: memref<32x12xbf16, #tpu.memory_space<vmem>>, %arg2: memref<12x32xbf16, #tpu.memory_space<vmem>>, %arg3: memref<1x32xf32, #tpu.memory_space<vmem>>, %arg4: memref<32x32xf32, #tpu.memory_space<vmem>>) attributes {dimension_semantics = [#tpu.dimension_semantics<parallel>], iteration_bounds = array<i64: 1>, scalar_prefetch = 0 : i64, scratch_operands = 0 : i64, tpu.core_type = #tpu.core_type<tc>, window_params = [{transform_indices = @transform_0, window_bounds = array<i64: 32, 12>}, {pipeline_mode = #tpu.pipeline_mode<synchronous>, transform_indices = @transform_1, window_bounds = array<i64: 12, 32>}, {pipeline_mode = #tpu.pipeline_mode<synchronous>, transform_indices = @transform_2, window_bounds = array<i64: 1, 32>}, {transform_indices = @transform_3, window_bounds = array<i64: 32, 32>}]} {
    %c0 = arith.constant 0 : index
    %c0_0 = arith.constant 0 : index
    %0 = vector.load %arg1[%c0, %c0_0] : memref<32x12xbf16, #tpu.memory_space<vmem>>, vector<32x12xbf16>
    %c0_1 = arith.constant 0 : index
    %c0_2 = arith.constant 0 : index
    %1 = vector.load %arg2[%c0_1, %c0_2] : memref<12x32xbf16, #tpu.memory_space<vmem>>, vector<12x32xbf16>
    %cst = arith.constant dense<0.000000e+00> : vector<32x32xf32>
    %2 = tpu.matmul %0, %1, %cst {dimension_numbers = #tpu.dot_dimension_numbers<[1], [0], [0], [1], [0, 0, 1, 1], [], []>} : vector<32x12xbf16>, vector<12x32xbf16>, vector<32x32xf32> -> vector<32x32xf32>
    %c0_3 = arith.constant 0 : index
    %c0_4 = arith.constant 0 : index
    %3 = vector.load %arg3[%c0_3, %c0_4] : memref<1x32xf32, #tpu.memory_space<vmem>>, vector<1x32xf32>
    %4 = vector.broadcast %3 : vector<1x32xf32> to vector<32x32xf32>
    %5 = arith.addf %2, %4 : vector<32x32xf32>
    %c0_5 = arith.constant 0 : index
    %c0_6 = arith.constant 0 : index
    %6 = vector.load %arg4[%c0_5, %c0_6] : memref<32x32xf32, #tpu.memory_space<vmem>>, vector<32x32xf32>
    tpu.vector_store %arg4[%c0_5, %c0_6], %5 {strides = array<i32>} : memref<32x32xf32, #tpu.memory_space<vmem>>, vector<32x32xf32>,
    return
  }
  func.func @transform_0(%arg0: i32) -> (i32, i32) {
    %c0_i32 = arith.constant 0 : i32
    %c0_i32_0 = arith.constant 0 : i32
    return %arg0, %c0_i32 : i32, i32
  }
  func.func @transform_1(%arg0: i32) -> (i32, i32) {
    %c0_i32 = arith.constant 0 : i32
    %c0_i32_0 = arith.constant 0 : i32
    %c0_i32_1 = arith.constant 0 : i32
    return %c0_i32, %c0_i32_0 : i32, i32
  }
  func.func @transform_2(%arg0: i32) -> (i32, i32) {
    %c0_i32 = arith.constant 0 : i32
    %c0_i32_0 = arith.constant 0 : i32
    %c0_i32_1 = arith.constant 0 : i32
    return %c0_i32, %c0_i32_0 : i32, i32
  }
  func.func @transform_3(%arg0: i32) -> (i32, i32) {
    %c0_i32 = arith.constant 0 : i32
    %c0_i32_0 = arith.constant 0 : i32
    return %arg0, %c0_i32 : i32, i32
  }
}

module attributes {stable_mosaic.version = 11 : i64} {
  func.func @kernel(%arg0: i32, %arg1: memref<32x96xbf16, #tpu.memory_space<vmem>>, %arg2: memref<96x32xbf16, #tpu.memory_space<vmem>>, %arg3: memref<1x32xf32, #tpu.memory_space<vmem>>, %arg4: memref<32x32xf32, #tpu.memory_space<vmem>>, %arg5: memref<1x2x32xf32, #tpu.memory_space<vmem>>) attributes {dimension_semantics = [#tpu.dimension_semantics<parallel>], iteration_bounds = array<i64: 1>, scalar_prefetch = 0 : i64, scratch_operands = 0 : i64, tpu.core_type = #tpu.core_type<tc>, window_params = [{transform_indices = @transform_0, window_bounds = array<i64: 32, 96>}, {pipeline_mode = #tpu.pipeline_mode<synchronous>, transform_indices = @transform_1, window_bounds = array<i64: 96, 32>}, {pipeline_mode = #tpu.pipeline_mode<synchronous>, transform_indices = @transform_2, window_bounds = array<i64: 1, 32>}, {transform_indices = @transform_3, window_bounds = array<i64: 32, 32>}, {transform_indices = @transform_4, window_bounds = array<i64: 1, 2, 32>}]} {
    %c0 = arith.constant 0 : index
    %c0_0 = arith.constant 0 : index
    %0 = vector.load %arg1[%c0, %c0_0] : memref<32x96xbf16, #tpu.memory_space<vmem>>, vector<32x96xbf16>
    %c0_1 = arith.constant 0 : index
    %c0_2 = arith.constant 0 : index
    %1 = vector.load %arg2[%c0_1, %c0_2] : memref<96x32xbf16, #tpu.memory_space<vmem>>, vector<96x32xbf16>
    %cst = arith.constant dense<0.000000e+00> : vector<32x32xf32>
    %2 = tpu.matmul %0, %1, %cst {dimension_numbers = #tpu.dot_dimension_numbers<[1], [0], [0], [1], [0, 0, 1, 1], [], []>} : vector<32x96xbf16>, vector<96x32xbf16>, vector<32x32xf32> -> vector<32x32xf32>
    %c0_3 = arith.constant 0 : index
    %c0_4 = arith.constant 0 : index
    %3 = vector.load %arg3[%c0_3, %c0_4] : memref<1x32xf32, #tpu.memory_space<vmem>>, vector<1x32xf32>
    %4 = vector.broadcast %3 : vector<1x32xf32> to vector<32x32xf32>
    %5 = arith.addf %2, %4 : vector<32x32xf32>
    %c0_5 = arith.constant 0 : index
    %c0_6 = arith.constant 0 : index
    %6 = vector.load %arg4[%c0_5, %c0_6] : memref<32x32xf32, #tpu.memory_space<vmem>>, vector<32x32xf32>
    tpu.vector_store %arg4[%c0_5, %c0_6], %5 {strides = array<i32>} : memref<32x32xf32, #tpu.memory_space<vmem>>, vector<32x32xf32>,
    %cst_7 = arith.constant dense<0.000000e+00> : vector<32xf32>
    %7 = vector.multi_reduction <add>, %5, %cst_7 [0] : vector<32x32xf32> to vector<32xf32>
    %8 = vector.shape_cast %7 : vector<32xf32> to vector<1x32xf32>
    %9 = arith.mulf %5, %5 : vector<32x32xf32>
    %cst_8 = arith.constant dense<0.000000e+00> : vector<32xf32>
    %10 = vector.multi_reduction <add>, %9, %cst_8 [0] : vector<32x32xf32> to vector<32xf32>
    %11 = vector.shape_cast %10 : vector<32xf32> to vector<1x32xf32>
    %12 = tpu.concatenate %8, %11 in 0 : vector<1x32xf32>, vector<1x32xf32> -> vector<2x32xf32>
    %13 = vector.shape_cast %12 : vector<2x32xf32> to vector<1x2x32xf32>
    %c0_9 = arith.constant 0 : index
    %c0_10 = arith.constant 0 : index
    %c0_11 = arith.constant 0 : index
    %14 = vector.load %arg5[%c0_9, %c0_10, %c0_11] : memref<1x2x32xf32, #tpu.memory_space<vmem>>, vector<1x2x32xf32>
    tpu.vector_store %arg5[%c0_9, %c0_10, %c0_11], %13 {strides = array<i32>} : memref<1x2x32xf32, #tpu.memory_space<vmem>>, vector<1x2x32xf32>,
    return
  }
  func.func @transform_0(%arg0: i32) -> (i32, i32) {
    %c0_i32 = arith.constant 0 : i32
    %c0_i32_0 = arith.constant 0 : i32
    return %arg0, %c0_i32 : i32, i32
  }
  func.func @transform_1(%arg0: i32) -> (i32, i32) {
    %c0_i32 = arith.constant 0 : i32
    %c0_i32_0 = arith.constant 0 : i32
    %c0_i32_1 = arith.constant 0 : i32
    return %c0_i32, %c0_i32_0 : i32, i32
  }
  func.func @transform_2(%arg0: i32) -> (i32, i32) {
    %c0_i32 = arith.constant 0 : i32
    %c0_i32_0 = arith.constant 0 : i32
    %c0_i32_1 = arith.constant 0 : i32
    return %c0_i32, %c0_i32_0 : i32, i32
  }
  func.func @transform_3(%arg0: i32) -> (i32, i32) {
    %c0_i32 = arith.constant 0 : i32
    %c0_i32_0 = arith.constant 0 : i32
    return %arg0, %c0_i32 : i32, i32
  }
  func.func @transform_4(%arg0: i32) -> (i32, i32, i32) {
    %c0_i32 = arith.constant 0 : i32
    %c0_i32_0 = arith.constant 0 : i32
    %c0_i32_1 = arith.constant 0 : i32
    return %arg0, %c0_i32, %c0_i32_0 : i32, i32, i32
  }
}

module attributes {stable_mosaic.version = 11 : i64} {
  func.func @kernel(%arg0: i32, %arg1: memref<32x32xf32, #tpu.memory_space<vmem>>, %arg2: memref<1x32xf32, #tpu.memory_space<vmem>>, %arg3: memref<1x32xf32, #tpu.memory_space<vmem>>, %arg4: memref<32x32xf32, #tpu.memory_space<vmem>>) attributes {dimension_semantics = [#tpu.dimension_semantics<parallel>], iteration_bounds = array<i64: 1>, scalar_prefetch = 0 : i64, scratch_operands = 0 : i64, tpu.core_type = #tpu.core_type<tc>, window_params = [{transform_indices = @transform_0, window_bounds = array<i64: 32, 32>}, {pipeline_mode = #tpu.pipeline_mode<synchronous>, transform_indices = @transform_1, window_bounds = array<i64: 1, 32>}, {pipeline_mode = #tpu.pipeline_mode<synchronous>, transform_indices = @transform_2, window_bounds = array<i64: 1, 32>}, {transform_indices = @transform_3, window_bounds = array<i64: 32, 32>}]} {
    %c0 = arith.constant 0 : index
    %c0_0 = arith.constant 0 : index
    %0 = vector.load %arg1[%c0, %c0_0] : memref<32x32xf32, #tpu.memory_space<vmem>>, vector<32x32xf32>
    %c0_1 = arith.constant 0 : index
    %c0_2 = arith.constant 0 : index
    %1 = vector.load %arg2[%c0_1, %c0_2] : memref<1x32xf32, #tpu.memory_space<vmem>>, vector<1x32xf32>
    %2 = vector.broadcast %1 : vector<1x32xf32> to vector<32x32xf32>
    %3 = arith.mulf %0, %2 : vector<32x32xf32>
    %c0_3 = arith.constant 0 : index
    %c0_4 = arith.constant 0 : index
    %4 = vector.load %arg3[%c0_3, %c0_4] : memref<1x32xf32, #tpu.memory_space<vmem>>, vector<1x32xf32>
    %5 = vector.broadcast %4 : vector<1x32xf32> to vector<32x32xf32>
    %6 = arith.addf %3, %5 : vector<32x32xf32>
    %cst = arith.constant 0.000000e+00 : f32
    %7 = vector.broadcast %cst : f32 to vector<32x32xf32>
    %8 = arith.maximumf %6, %7 : vector<32x32xf32>
    %c0_5 = arith.constant 0 : index
    %c0_6 = arith.constant 0 : index
    %9 = vector.load %arg4[%c0_5, %c0_6] : memref<32x32xf32, #tpu.memory_space<vmem>>, vector<32x32xf32>
    tpu.vector_store %arg4[%c0_5, %c0_6], %8 {strides = array<i32>} : memref<32x32xf32, #tpu.memory_space<vmem>>, vector<32x32xf32>,
    return
  }
  func.func @transform_0(%arg0: i32) -> (i32, i32) {
    %c0_i32 = arith.constant 0 : i32
    %c0_i32_0 = arith.constant 0 : i32
    return %arg0, %c0_i32 : i32, i32
  }
  func.func @transform_1(%arg0: i32) -> (i32, i32) {
    %c0_i32 = arith.constant 0 : i32
    %c0_i32_0 = arith.constant 0 : i32
    %c0_i32_1 = arith.constant 0 : i32
    return %c0_i32, %c0_i32_0 : i32, i32
  }
  func.func @transform_2(%arg0: i32) -> (i32, i32) {
    %c0_i32 = arith.constant 0 : i32
    %c0_i32_0 = arith.constant 0 : i32
    %c0_i32_1 = arith.constant 0 : i32
    return %c0_i32, %c0_i32_0 : i32, i32
  }
  func.func @transform_3(%arg0: i32) -> (i32, i32) {
    %c0_i32 = arith.constant 0 : i32
    %c0_i32_0 = arith.constant 0 : i32
    return %arg0, %c0_i32 : i32, i32
  }
}

module attributes {stable_mosaic.version = 11 : i64} {
  func.func @kernel(%arg0: i32, %arg1: memref<32x32xf32, #tpu.memory_space<vmem>>, %arg2: memref<1x32xf32, #tpu.memory_space<vmem>>, %arg3: memref<1x32xf32, #tpu.memory_space<vmem>>, %arg4: memref<32x32xf32, #tpu.memory_space<vmem>>, %arg5: memref<32x32xf32, #tpu.memory_space<vmem>>) attributes {dimension_semantics = [#tpu.dimension_semantics<parallel>], iteration_bounds = array<i64: 1>, scalar_prefetch = 0 : i64, scratch_operands = 0 : i64, tpu.core_type = #tpu.core_type<tc>, window_params = [{transform_indices = @transform_0, window_bounds = array<i64: 32, 32>}, {pipeline_mode = #tpu.pipeline_mode<synchronous>, transform_indices = @transform_1, window_bounds = array<i64: 1, 32>}, {pipeline_mode = #tpu.pipeline_mode<synchronous>, transform_indices = @transform_2, window_bounds = array<i64: 1, 32>}, {transform_indices = @transform_3, window_bounds = array<i64: 32, 32>}, {transform_indices = @transform_4, window_bounds = array<i64: 32, 32>}]} {
    %c0 = arith.constant 0 : index
    %c0_0 = arith.constant 0 : index
    %0 = vector.load %arg1[%c0, %c0_0] : memref<32x32xf32, #tpu.memory_space<vmem>>, vector<32x32xf32>
    %c0_1 = arith.constant 0 : index
    %c0_2 = arith.constant 0 : index
    %1 = vector.load %arg2[%c0_1, %c0_2] : memref<1x32xf32, #tpu.memory_space<vmem>>, vector<1x32xf32>
    %2 = vector.broadcast %1 : vector<1x32xf32> to vector<32x32xf32>
    %3 = arith.mulf %0, %2 : vector<32x32xf32>
    %c0_3 = arith.constant 0 : index
    %c0_4 = arith.constant 0 : index
    %4 = vector.load %arg3[%c0_3, %c0_4] : memref<1x32xf32, #tpu.memory_space<vmem>>, vector<1x32xf32>
    %5 = vector.broadcast %4 : vector<1x32xf32> to vector<32x32xf32>
    %6 = arith.addf %3, %5 : vector<32x32xf32>
    %c0_5 = arith.constant 0 : index
    %c0_6 = arith.constant 0 : index
    %7 = vector.load %arg4[%c0_5, %c0_6] : memref<32x32xf32, #tpu.memory_space<vmem>>, vector<32x32xf32>
    %8 = arith.addf %6, %7 : vector<32x32xf32>
    %cst = arith.constant 0.000000e+00 : f32
    %9 = vector.broadcast %cst : f32 to vector<32x32xf32>
    %10 = arith.maximumf %8, %9 : vector<32x32xf32>
    %c0_7 = arith.constant 0 : index
    %c0_8 = arith.constant 0 : index
    %11 = vector.load %arg5[%c0_7, %c0_8] : memref<32x32xf32, #tpu.memory_space<vmem>>, vector<32x32xf32>
    tpu.vector_store %arg5[%c0_7, %c0_8], %10 {strides = array<i32>} : memref<32x32xf32, #tpu.memory_space<vmem>>, vector<32x32xf32>,
    return
  }
  func.func @transform_0(%arg0: i32) -> (i32, i32) {
    %c0_i32 = arith.constant 0 : i32
    %c0_i32_0 = arith.constant 0 : i32
    return %arg0, %c0_i32 : i32, i32
  }
  func.func @transform_1(%arg0: i32) -> (i32, i32) {
    %c0_i32 = arith.constant 0 : i32
    %c0_i32_0 = arith.constant 0 : i32
    %c0_i32_1 = arith.constant 0 : i32
    return %c0_i32, %c0_i32_0 : i32, i32
  }
  func.func @transform_2(%arg0: i32) -> (i32, i32) {
    %c0_i32 = arith.constant 0 : i32
    %c0_i32_0 = arith.constant 0 : i32
    %c0_i32_1 = arith.constant 0 : i32
    return %c0_i32, %c0_i32_0 : i32, i32
  }
  func.func @transform_3(%arg0: i32) -> (i32, i32) {
    %c0_i32 = arith.constant 0 : i32
    %c0_i32_0 = arith.constant 0 : i32
    return %arg0, %c0_i32 : i32, i32
  }
  func.func @transform_4(%arg0: i32) -> (i32, i32) {
    %c0_i32 = arith.constant 0 : i32
    %c0_i32_0 = arith.constant 0 : i32
    return %arg0, %c0_i32 : i32, i32
  }
}

module attributes {stable_mosaic.version = 11 : i64} {
  func.func @kernel(%arg0: i32, %arg1: memref<32x96xbf16, #tpu.memory_space<vmem>>, %arg2: memref<96x32xbf16, #tpu.memory_space<vmem>>, %arg3: memref<1x32xf32, #tpu.memory_space<vmem>>, %arg4: memref<32x32xf32, #tpu.memory_space<vmem>>) attributes {dimension_semantics = [#tpu.dimension_semantics<parallel>], iteration_bounds = array<i64: 1>, scalar_prefetch = 0 : i64, scratch_operands = 0 : i64, tpu.core_type = #tpu.core_type<tc>, window_params = [{transform_indices = @transform_0, window_bounds = array<i64: 32, 96>}, {pipeline_mode = #tpu.pipeline_mode<synchronous>, transform_indices = @transform_1, window_bounds = array<i64: 96, 32>}, {pipeline_mode = #tpu.pipeline_mode<synchronous>, transform_indices = @transform_2, window_bounds = array<i64: 1, 32>}, {transform_indices = @transform_3, window_bounds = array<i64: 32, 32>}]} {
    %c0 = arith.constant 0 : index
    %c0_0 = arith.constant 0 : index
    %0 = vector.load %arg1[%c0, %c0_0] : memref<32x96xbf16, #tpu.memory_space<vmem>>, vector<32x96xbf16>
    %c0_1 = arith.constant 0 : index
    %c0_2 = arith.constant 0 : index
    %1 = vector.load %arg2[%c0_1, %c0_2] : memref<96x32xbf16, #tpu.memory_space<vmem>>, vector<96x32xbf16>
    %cst = arith.constant dense<0.000000e+00> : vector<32x32xf32>
    %2 = tpu.matmul %0, %1, %cst {dimension_numbers = #tpu.dot_dimension_numbers<[1], [0], [0], [1], [0, 0, 1, 1], [], []>} : vector<32x96xbf16>, vector<96x32xbf16>, vector<32x32xf32> -> vector<32x32xf32>
    %c0_3 = arith.constant 0 : index
    %c0_4 = arith.constant 0 : index
    %3 = vector.load %arg3[%c0_3, %c0_4] : memref<1x32xf32, #tpu.memory_space<vmem>>, vector<1x32xf32>
    %4 = vector.broadcast %3 : vector<1x32xf32> to vector<32x32xf32>
    %5 = arith.addf %2, %4 : vector<32x32xf32>
    %c0_5 = arith.constant 0 : index
    %c0_6 = arith.constant 0 : index
    %6 = vector.load %arg4[%c0_5, %c0_6] : memref<32x32xf32, #tpu.memory_space<vmem>>, vector<32x32xf32>
    tpu.vector_store %arg4[%c0_5, %c0_6], %5 {strides = array<i32>} : memref<32x32xf32, #tpu.memory_space<vmem>>, vector<32x32xf32>,
    return
  }
  func.func @transform_0(%arg0: i32) -> (i32, i32) {
    %c0_i32 = arith.constant 0 : i32
    %c0_i32_0 = arith.constant 0 : i32
    return %arg0, %c0_i32 : i32, i32
  }
  func.func @transform_1(%arg0: i32) -> (i32, i32) {
    %c0_i32 = arith.constant 0 : i32
    %c0_i32_0 = arith.constant 0 : i32
    %c0_i32_1 = arith.constant 0 : i32
    return %c0_i32, %c0_i32_0 : i32, i32
  }
  func.func @transform_2(%arg0: i32) -> (i32, i32) {
    %c0_i32 = arith.constant 0 : i32
    %c0_i32_0 = arith.constant 0 : i32
    %c0_i32_1 = arith.constant 0 : i32
    return %c0_i32, %c0_i32_0 : i32, i32
  }
  func.func @transform_3(%arg0: i32) -> (i32, i32) {
    %c0_i32 = arith.constant 0 : i32
    %c0_i32_0 = arith.constant 0 : i32
    return %arg0, %c0_i32 : i32, i32
  }
}

</mosaic_0001>

<llo_original>
// kernel: dilated_conv_encoder_forward.20
$region0: #{dilated_conv_encoder_forward.20}
  #allocation0 [shape = 'u32[]', space=smem, size = 0x4, offset = 0x4, fixed_abs, tag = 'smem constant byte address 0x4 - core index']
  #allocation1 [shape = 'u32[72,128]{1,0:T(1,128)}', space=vmem, size = 0x9000, scoped, tag = 'internal scratch']
  %s0 = inlined_call_operand.vmem [shape: f32[32,32], index: 0, kind: input, shape index: {}]
  %s1 = inlined_call_operand.vmem [shape: f32[1,32], index: 1, kind: input, shape index: {}]
  %s2 = inlined_call_operand.vmem [shape: f32[1,32], index: 2, kind: input, shape index: {}]
  %s3 = inlined_call_operand.vmem [shape: f32[32,32], index: 3, kind: output, shape index: {}]
  %s4 = sld [smem:[#allocation0]]
  $region22: #{dilated_conv_encoder_forward.20} parent=0
    _
  %s6 = ssub.s32 1, %s4
  %s7 = scalar_select 0, %s6, %s4
  // Predicated region
  $region2: #{dilated_conv_encoder_forward.20} parent=0 // pred_check
    _
  $region3: #{dilated_conv_encoder_forward.20} parent=0 // pred_check_branch
    %9 = sbr.rel (0) target = $region5
  $region4: #{dilated_conv_encoder_forward.20} parent=0 // pred_region
    _
  $region5: #{dilated_conv_encoder_forward.20} parent=0 // pred_fallthru
    _
  // Predicated region
  $region6: #{dilated_conv_encoder_forward.20} parent=0 // pred_check
    _
  $region7: #{dilated_conv_encoder_forward.20} parent=0 // pred_check_branch
    %11 = sbr.rel (0) target = $region9
  $region8: #{dilated_conv_encoder_forward.20} parent=0 // pred_region
    _
  $region9: #{dilated_conv_encoder_forward.20} parent=0 // pred_fallthru
    _
  // Predicated region
  $region10: #{dilated_conv_encoder_forward.20} parent=0 // pred_check
    _
  $region11: #{dilated_conv_encoder_forward.20} parent=0 // pred_check_branch
    %13 = sbr.rel (0) target = $region13
  $region12: #{dilated_conv_encoder_forward.20} parent=0 // pred_region
    _
  $region13: #{dilated_conv_encoder_forward.20} parent=0 // pred_fallthru
    _
  %v14 = vld [vmem:[%s0] sm:$0xff]
  %v15 = vld [vmem:[%s0 + $0x8] sm:$0xff]
  %v16 = vld [vmem:[%s0 + $0x10] sm:$0xff]
  %v17 = vld [vmem:[%s0 + $0x18] sm:$0xff]
  %v18 = vld [vmem:[%s1] sm:$0x1]
  %v20 = vperm.slane %v18, 0
  %v22 = vmul.f32 %v14, %v20
  %v23 = vmul.f32 %v15, %v20
  %v24 = vmul.f32 %v16, %v20
  %v25 = vmul.f32 %v17, %v20
  %v26 = vld [vmem:[%s2] sm:$0x1]
  %v28 = vperm.slane %v26, 0
  %v30 = vadd.f32 %v22, %v28
  %v31 = vadd.f32 %v23, %v28
  %v32 = vadd.f32 %v24, %v28
  %v33 = vadd.f32 %v25, %v28
  %v34 = vmax.f32 %v30, 0.0
  %v35 = vmax.f32 %v31, 0.0
  %v36 = vmax.f32 %v32, 0.0
  %v37 = vmax.f32 %v33, 0.0
  %vm38 = vcmask 261120
  %39 = vst.msk [vmem:[%s3] sm:$0xff] %vm38, %v34
  %40 = vst.msk [vmem:[%s3 + $0x8] sm:$0xff] %vm38, %v35
  %41 = vst.msk [vmem:[%s3 + $0x10] sm:$0xff] %vm38, %v36
  %42 = vst.msk [vmem:[%s3 + $0x18] sm:$0xff] %vm38, %v37
  // Predicated region
  $region14: #{dilated_conv_encoder_forward.20} parent=0 // pred_check
    _
  $region15: #{dilated_conv_encoder_forward.20} parent=0 // pred_check_branch
    %44 = sbr.rel (0) target = $region17
  $region16: #{dilated_conv_encoder_forward.20} parent=0 // pred_region
    _
  $region17: #{dilated_conv_encoder_forward.20} parent=0 // pred_fallthru
    _
  // Predicated region
  $region18: #{dilated_conv_encoder_forward.20} parent=0 // pred_check
    _
  $region19: #{dilated_conv_encoder_forward.20} parent=0 // pred_check_branch
    %46 = sbr.rel (0) target = $region21
  $region20: #{dilated_conv_encoder_forward.20} parent=0 // pred_region
    _
  $region21: #{dilated_conv_encoder_forward.20} parent=0 // pred_fallthru
    _

// kernel: dilated_conv_encoder_forward.18
$region0: #{dilated_conv_encoder_forward.18}
  #allocation0 [shape = 'u32[]', space=smem, size = 0x4, offset = 0x4, fixed_abs, tag = 'smem constant byte address 0x4 - core index']
  #allocation1 [shape = 'u32[72,128]{1,0:T(1,128)}', space=vmem, size = 0x9000, scoped, tag = 'internal scratch']
  %s0 = inlined_call_operand.vmem [shape: bf16[32,12], index: 0, kind: input, shape index: {}]
  %s1 = inlined_call_operand.vmem [shape: bf16[12,32], index: 1, kind: input, shape index: {}]
  %s2 = inlined_call_operand.vmem [shape: f32[1,32], index: 2, kind: input, shape index: {}]
  %s3 = inlined_call_operand.vmem [shape: f32[32,32], index: 3, kind: output, shape index: {}]
  %s4 = sld [smem:[#allocation0]]
  $region22: #{dilated_conv_encoder_forward.18} parent=0
    _
  %s6 = ssub.s32 1, %s4
  %s7 = scalar_select 0, %s6, %s4
  // Predicated region
  $region2: #{dilated_conv_encoder_forward.18} parent=0 // pred_check
    _
  $region3: #{dilated_conv_encoder_forward.18} parent=0 // pred_check_branch
    %9 = sbr.rel (0) target = $region5
  $region4: #{dilated_conv_encoder_forward.18} parent=0 // pred_region
    _
  $region5: #{dilated_conv_encoder_forward.18} parent=0 // pred_fallthru
    _
  // Predicated region
  $region6: #{dilated_conv_encoder_forward.18} parent=0 // pred_check
    _
  $region7: #{dilated_conv_encoder_forward.18} parent=0 // pred_check_branch
    %11 = sbr.rel (0) target = $region9
  $region8: #{dilated_conv_encoder_forward.18} parent=0 // pred_region
    _
  $region9: #{dilated_conv_encoder_forward.18} parent=0 // pred_fallthru
    _
  // Predicated region
  $region10: #{dilated_conv_encoder_forward.18} parent=0 // pred_check
    _
  $region11: #{dilated_conv_encoder_forward.18} parent=0 // pred_check_branch
    %13 = sbr.rel (0) target = $region13
  $region12: #{dilated_conv_encoder_forward.18} parent=0 // pred_region
    _
  $region13: #{dilated_conv_encoder_forward.18} parent=0 // pred_fallthru
    _
  %v15 = vld [vmem:[%s0] sm:$0xf]
  %v16 = vld [vmem:[%s0 + $0x4] sm:$0xf]
  %v17 = vld [vmem:[%s0 + $0x8] sm:$0xf]
  %v18 = vld [vmem:[%s0 + $0xc] sm:$0xf]
  %v19 = vld [vmem:[%s1] sm:$0xf]
  %v20 = vld [vmem:[%s1 + $0x4] sm:$0x3]
  %v21 = vld [vmem:[%s2] sm:$0x1]
  %v23 = vperm.slane %v21, 0
  %v29 = vunpack.c.l.b16 %v15
  %v30 = vunpack.c.l.b16 %v16
  %v31 = vunpack.c.l.b16 %v17
  %v32 = vunpack.c.l.b16 %v18
  %v33 = vpack.c.b16 %v30, %v29
  %v34 = vpack.c.b16 %v32, %v31
  %v37 = vunpack.c.l.b16 %v19
  %v38 = vunpack.c.l.b16 %v20
  %v39 = vpack.c.b16 %v38, %v37
  %vm40 = vcmask 97280
  %v42 = vsel %vm40, %v33, 0
  %v45 = vsel %vm40, %v34, 0
  %vm47 = vcmask 1045504
  %v49 = vsel %vm47, %v39, 0
  %51 = vmatpush.bf16.msra.mxu0 0
  %52 = vmatpush.bf16.msra.mxu0 0
  %53 = vmatpush.bf16.msra.mxu0 0
  %54 = vmatpush.bf16.msra.mxu0 0
  %55 = vmatpush.bf16.msra.mxu0 0
  %56 = vmatpush.bf16.msra.mxu0 0
  %57 = vmatpush.bf16.msra.mxu0 0
  %58 = vmatpush.bf16.msra.mxu0 %v49
  %59 = vmatmul.bf16.gmra.mxu0 %v42
  %v60 = vpop.f32.mrf.mxu0
  %v61 = vadd.f32 %v23, %v60
  %v62 = vpop.f32.mrf.mxu0
  %v63 = vadd.f32 %v23, %v62
  %64 = vmatmul.bf16.gmra.mxu0 %v45
  %v65 = vpop.f32.mrf.mxu0
  %v66 = vadd.f32 %v23, %v65
  %v67 = vpop.f32.mrf.mxu0
  %v68 = vadd.f32 %v23, %v67
  %69 = vdwg.mxu0
  %vm70 = vcmask 261120
  %71 = vst.msk [vmem:[%s3] sm:$0xff] %vm70, %v61
  %72 = vst.msk [vmem:[%s3 + $0x8] sm:$0xff] %vm70, %v63
  %73 = vst.msk [vmem:[%s3 + $0x10] sm:$0xff] %vm70, %v66
  %74 = vst.msk [vmem:[%s3 + $0x18] sm:$0xff] %vm70, %v68
  // Predicated region
  $region14: #{dilated_conv_encoder_forward.18} parent=0 // pred_check
    _
  $region15: #{dilated_conv_encoder_forward.18} parent=0 // pred_check_branch
    %76 = sbr.rel (0) target = $region17
  $region16: #{dilated_conv_encoder_forward.18} parent=0 // pred_region
    _
  $region17: #{dilated_conv_encoder_forward.18} parent=0 // pred_fallthru
    _
  // Predicated region
  $region18: #{dilated_conv_encoder_forward.18} parent=0 // pred_check
    _
  $region19: #{dilated_conv_encoder_forward.18} parent=0 // pred_check_branch
    %78 = sbr.rel (0) target = $region21
  $region20: #{dilated_conv_encoder_forward.18} parent=0 // pred_region
    _
  $region21: #{dilated_conv_encoder_forward.18} parent=0 // pred_fallthru
    _

// kernel: dilated_conv_encoder_forward.19
$region0: #{dilated_conv_encoder_forward.19}
  #allocation0 [shape = 'u32[]', space=smem, size = 0x4, offset = 0x4, fixed_abs, tag = 'smem constant byte address 0x4 - core index']
  #allocation1 [shape = 'u32[72,128]{1,0:T(1,128)}', space=vmem, size = 0x9000, scoped, tag = 'internal scratch']
  %s0 = inlined_call_operand.vmem [shape: bf16[32,96], index: 0, kind: input, shape index: {}]
  %s1 = inlined_call_operand.vmem [shape: bf16[96,32], index: 1, kind: input, shape index: {}]
  %s2 = inlined_call_operand.vmem [shape: f32[1,32], index: 2, kind: input, shape index: {}]
  %s3 = inlined_call_operand.vmem [shape: f32[32,32], index: 3, kind: output, shape index: {0}]
  %s4 = inlined_call_operand.vmem [shape: f32[1,2,32], index: 4, kind: output, shape index: {1}]
  %5 = xla_tuple %s3, %s4
  %s6 = sld [smem:[#allocation0]]
  $region30: #{dilated_conv_encoder_forward.19} parent=0
    _
  %s8 = ssub.s32 1, %s6
  %s9 = scalar_select 0, %s8, %s6
  // Predicated region
  $region2: #{dilated_conv_encoder_forward.19} parent=0 // pred_check
    _
  $region3: #{dilated_conv_encoder_forward.19} parent=0 // pred_check_branch
    %11 = sbr.rel (0) target = $region5
  $region4: #{dilated_conv_encoder_forward.19} parent=0 // pred_region
    _
  $region5: #{dilated_conv_encoder_forward.19} parent=0 // pred_fallthru
    _
  // Predicated region
  $region6: #{dilated_conv_encoder_forward.19} parent=0 // pred_check
    _
  $region7: #{dilated_conv_encoder_forward.19} parent=0 // pred_check_branch
    %13 = sbr.rel (0) target = $region9
  $region8: #{dilated_conv_encoder_forward.19} parent=0 // pred_region
    _
  $region9: #{dilated_conv_encoder_forward.19} parent=0 // pred_fallthru
    _
  // Predicated region
  $region10: #{dilated_conv_encoder_forward.19} parent=0 // pred_check
    _
  $region11: #{dilated_conv_encoder_forward.19} parent=0 // pred_check_branch
    %15 = sbr.rel (0) target = $region13
  $region12: #{dilated_conv_encoder_forward.19} parent=0 // pred_region
    _
  $region13: #{dilated_conv_encoder_forward.19} parent=0 // pred_fallthru
    _
  %v17 = vld [vmem:[%s0] sm:$0xf]
  %v18 = vld [vmem:[%s0 + $0x4] sm:$0xf]
  %v19 = vld [vmem:[%s0 + $0x8] sm:$0xf]
  %v20 = vld [vmem:[%s0 + $0xc] sm:$0xf]
  %v21 = vld [vmem:[%s1] sm:$0xf]
  %v22 = vld [vmem:[%s1 + $0x4] sm:$0xf]
  %v23 = vld [vmem:[%s1 + $0x8] sm:$0xf]
  %v24 = vld [vmem:[%s1 + $0xc] sm:$0xf]
  %v25 = vld [vmem:[%s1 + $0x10] sm:$0xf]
  %v26 = vld [vmem:[%s1 + $0x14] sm:$0xf]
  %v27 = vld [vmem:[%s1 + $0x18] sm:$0xf]
  %v28 = vld [vmem:[%s1 + $0x1c] sm:$0xf]
  %v29 = vld [vmem:[%s1 + $0x20] sm:$0xf]
  %v30 = vld [vmem:[%s1 + $0x24] sm:$0xf]
  %v31 = vld [vmem:[%s1 + $0x28] sm:$0xf]
  %v32 = vld [vmem:[%s1 + $0x2c] sm:$0xf]
  %v33 = vld [vmem:[%s2] sm:$0x1]
  %v35 = vperm.slane %v33, 0
  %v41 = vunpack.c.l.b16 %v17
  %v42 = vunpack.c.l.b16 %v18
  %v43 = vunpack.c.l.b16 %v19
  %v44 = vunpack.c.l.b16 %v20
  %v45 = vpack.c.b16 %v42, %v41
  %v46 = vpack.c.b16 %v44, %v43
  %v59 = vunpack.c.l.b16 %v21
  %v60 = vunpack.c.l.b16 %v22
  %v61 = vunpack.c.l.b16 %v23
  %v62 = vunpack.c.l.b16 %v24
  %v63 = vunpack.c.l.b16 %v25
  %v64 = vunpack.c.l.b16 %v26
  %v65 = vunpack.c.l.b16 %v27
  %v66 = vunpack.c.l.b16 %v28
  %v67 = vunpack.c.l.b16 %v29
  %v68 = vunpack.c.l.b16 %v30
  %v69 = vunpack.c.l.b16 %v31
  %v70 = vunpack.c.l.b16 %v32
  %v71 = vpack.c.b16 %v60, %v59
  %v72 = vpack.c.b16 %v62, %v61
  %v73 = vpack.c.b16 %v64, %v63
  %v74 = vpack.c.b16 %v66, %v65
  %v75 = vpack.c.b16 %v68, %v67
  %v76 = vpack.c.b16 %v70, %v69
  %vm83 = vcmask 785408
  %v85 = vsel %vm83, %v45, 0
  %v88 = vsel %vm83, %v46, 0
  %90 = vmatpush.bf16.msra.mxu0 0
  %91 = vmatpush.bf16.msra.mxu0 0
  %92 = vmatpush.bf16.msra.mxu0 %v76
  %93 = vmatpush.bf16.msra.mxu0 %v75
  %94 = vmatpush.bf16.msra.mxu0 %v74
  %95 = vmatpush.bf16.msra.mxu0 %v73
  %96 = vmatpush.bf16.msra.mxu0 %v72
  %97 = vmatpush.bf16.msra.mxu0 %v71
  %98 = vmatmul.bf16.gmra.mxu0 %v85
  %v99 = vpop.f32.mrf.mxu0
  %v100 = vadd.f32 %v35, %v99
  %v101 = vpop.f32.mrf.mxu0
  %v102 = vadd.f32 %v35, %v101
  %103 = vmatmul.bf16.gmra.mxu0 %v88
  %v104 = vpop.f32.mrf.mxu0
  %v105 = vadd.f32 %v35, %v104
  %v106 = vpop.f32.mrf.mxu0
  %v107 = vadd.f32 %v35, %v106
  %108 = vdwg.mxu0
  %vm109 = vcmask 261120
  %110 = vst.msk [vmem:[%s3] sm:$0xff] %vm109, %v100
  %111 = vst.msk [vmem:[%s3 + $0x8] sm:$0xff] %vm109, %v102
  %112 = vst.msk [vmem:[%s3 + $0x10] sm:$0xff] %vm109, %v105
  %113 = vst.msk [vmem:[%s3 + $0x18] sm:$0xff] %vm109, %v107
  %v114 = vsel %vm109, %v100, 0.0
  %v115 = vsel %vm109, %v102, 0.0
  %v116 = vadd.f32 %v114, %v115
  %v117 = vsel %vm109, %v105, 0.0
  %v118 = vadd.f32 %v116, %v117
  %v119 = vsel %vm109, %v107, 0.0
  %v120 = vadd.f32 %v118, %v119
  %v121 = vrot.slane %v120, 4
  %v122 = vadd.f32 %v120, %v121
  %v123 = vrot.slane %v122, 2
  %v124 = vadd.f32 %v122, %v123
  %v125 = vrot.slane %v124, 1
  %v126 = vadd.f32 %v124, %v125
  %v127 = vmul.f32 %v100, %v100
  %v128 = vmul.f32 %v102, %v102
  %v129 = vmul.f32 %v105, %v105
  %v130 = vmul.f32 %v107, %v107
  %v131 = vsel %vm109, %v127, 0.0
  %v132 = vsel %vm109, %v128, 0.0
  %v133 = vadd.f32 %v131, %v132
  %v134 = vsel %vm109, %v129, 0.0
  %v135 = vadd.f32 %v133, %v134
  %v136 = vsel %vm109, %v130, 0.0
  %v137 = vadd.f32 %v135, %v136
  %v138 = vrot.slane %v137, 4
  %v139 = vadd.f32 %v137, %v138
  %v140 = vrot.slane %v139, 2
  %v141 = vadd.f32 %v139, %v140
  %v142 = vrot.slane %v141, 1
  %v143 = vadd.f32 %v141, %v142
  %vm144 = vcmask 1040384
  %v145 = vsel %vm144, %v126, %v143
  %vm146 = vcmask 254976
  %147 = vst.msk [vmem:[%s4] sm:$0x3] %vm146, %v145
  // Predicated region
  $region14: #{dilated_conv_encoder_forward.19} parent=0 // pred_check
    _
  $region15: #{dilated_conv_encoder_forward.19} parent=0 // pred_check_branch
    %149 = sbr.rel (0) target = $region17
  $region16: #{dilated_conv_encoder_forward.19} parent=0 // pred_region
    _
  $region17: #{dilated_conv_encoder_forward.19} parent=0 // pred_fallthru
    _
  // Predicated region
  $region18: #{dilated_conv_encoder_forward.19} parent=0 // pred_check
    _
  $region19: #{dilated_conv_encoder_forward.19} parent=0 // pred_check_branch
    %151 = sbr.rel (0) target = $region21
  $region20: #{dilated_conv_encoder_forward.19} parent=0 // pred_region
    _
  $region21: #{dilated_conv_encoder_forward.19} parent=0 // pred_fallthru
    _
  // Predicated region
  $region22: #{dilated_conv_encoder_forward.19} parent=0 // pred_check
    _
  $region23: #{dilated_conv_encoder_forward.19} parent=0 // pred_check_branch
    %153 = sbr.rel (0) target = $region25
  $region24: #{dilated_conv_encoder_forward.19} parent=0 // pred_region
    _
  $region25: #{dilated_conv_encoder_forward.19} parent=0 // pred_fallthru
    _
  // Predicated region
  $region26: #{dilated_conv_encoder_forward.19} parent=0 // pred_check
    _
  $region27: #{dilated_conv_encoder_forward.19} parent=0 // pred_check_branch
    %155 = sbr.rel (0) target = $region29
  $region28: #{dilated_conv_encoder_forward.19} parent=0 // pred_region
    _
  $region29: #{dilated_conv_encoder_forward.19} parent=0 // pred_fallthru
    _

// kernel: dilated_conv_encoder_forward.22
$region0: #{dilated_conv_encoder_forward.22}
  #allocation0 [shape = 'u32[]', space=smem, size = 0x4, offset = 0x4, fixed_abs, tag = 'smem constant byte address 0x4 - core index']
  #allocation1 [shape = 'u32[72,128]{1,0:T(1,128)}', space=vmem, size = 0x9000, scoped, tag = 'internal scratch']
  %s0 = inlined_call_operand.vmem [shape: f32[32,32], index: 0, kind: input, shape index: {}]
  %s1 = inlined_call_operand.vmem [shape: f32[1,32], index: 1, kind: input, shape index: {}]
  %s2 = inlined_call_operand.vmem [shape: f32[1,32], index: 2, kind: input, shape index: {}]
  %s3 = inlined_call_operand.vmem [shape: f32[32,32], index: 3, kind: input, shape index: {}]
  %s4 = inlined_call_operand.vmem [shape: f32[32,32], index: 4, kind: output, shape index: {}]
  %s5 = sld [smem:[#allocation0]]
  $region26: #{dilated_conv_encoder_forward.22} parent=0
    _
  %s7 = ssub.s32 1, %s5
  %s8 = scalar_select 0, %s7, %s5
  // Predicated region
  $region2: #{dilated_conv_encoder_forward.22} parent=0 // pred_check
    _
  $region3: #{dilated_conv_encoder_forward.22} parent=0 // pred_check_branch
    %10 = sbr.rel (0) target = $region5
  $region4: #{dilated_conv_encoder_forward.22} parent=0 // pred_region
    _
  $region5: #{dilated_conv_encoder_forward.22} parent=0 // pred_fallthru
    _
  // Predicated region
  $region6: #{dilated_conv_encoder_forward.22} parent=0 // pred_check
    _
  $region7: #{dilated_conv_encoder_forward.22} parent=0 // pred_check_branch
    %12 = sbr.rel (0) target = $region9
  $region8: #{dilated_conv_encoder_forward.22} parent=0 // pred_region
    _
  $region9: #{dilated_conv_encoder_forward.22} parent=0 // pred_fallthru
    _
  // Predicated region
  $region10: #{dilated_conv_encoder_forward.22} parent=0 // pred_check
    _
  $region11: #{dilated_conv_encoder_forward.22} parent=0 // pred_check_branch
    %14 = sbr.rel (0) target = $region13
  $region12: #{dilated_conv_encoder_forward.22} parent=0 // pred_region
    _
  $region13: #{dilated_conv_encoder_forward.22} parent=0 // pred_fallthru
    _
  // Predicated region
  $region14: #{dilated_conv_encoder_forward.22} parent=0 // pred_check
    _
  $region15: #{dilated_conv_encoder_forward.22} parent=0 // pred_check_branch
    %16 = sbr.rel (0) target = $region17
  $region16: #{dilated_conv_encoder_forward.22} parent=0 // pred_region
    _
  $region17: #{dilated_conv_encoder_forward.22} parent=0 // pred_fallthru
    _
  %v17 = vld [vmem:[%s0] sm:$0xff]
  %v18 = vld [vmem:[%s0 + $0x8] sm:$0xff]
  %v19 = vld [vmem:[%s0 + $0x10] sm:$0xff]
  %v20 = vld [vmem:[%s0 + $0x18] sm:$0xff]
  %v21 = vld [vmem:[%s1] sm:$0x1]
  %v23 = vperm.slane %v21, 0
  %v25 = vmul.f32 %v17, %v23
  %v26 = vmul.f32 %v18, %v23
  %v27 = vmul.f32 %v19, %v23
  %v28 = vmul.f32 %v20, %v23
  %v29 = vld [vmem:[%s2] sm:$0x1]
  %v31 = vperm.slane %v29, 0
  %v33 = vadd.f32 %v25, %v31
  %v34 = vadd.f32 %v26, %v31
  %v35 = vadd.f32 %v27, %v31
  %v36 = vadd.f32 %v28, %v31
  %v37 = vld [vmem:[%s3] sm:$0xff]
  %v38 = vld [vmem:[%s3 + $0x8] sm:$0xff]
  %v39 = vld [vmem:[%s3 + $0x10] sm:$0xff]
  %v40 = vld [vmem:[%s3 + $0x18] sm:$0xff]
  %v41 = vadd.f32 %v33, %v37
  %v42 = vadd.f32 %v34, %v38
  %v43 = vadd.f32 %v35, %v39
  %v44 = vadd.f32 %v36, %v40
  %v45 = vmax.f32 %v41, 0.0
  %v46 = vmax.f32 %v42, 0.0
  %v47 = vmax.f32 %v43, 0.0
  %v48 = vmax.f32 %v44, 0.0
  %vm49 = vcmask 261120
  %50 = vst.msk [vmem:[%s4] sm:$0xff] %vm49, %v45
  %51 = vst.msk [vmem:[%s4 + $0x8] sm:$0xff] %vm49, %v46
  %52 = vst.msk [vmem:[%s4 + $0x10] sm:$0xff] %vm49, %v47
  %53 = vst.msk [vmem:[%s4 + $0x18] sm:$0xff] %vm49, %v48
  // Predicated region
  $region18: #{dilated_conv_encoder_forward.22} parent=0 // pred_check
    _
  $region19: #{dilated_conv_encoder_forward.22} parent=0 // pred_check_branch
    %55 = sbr.rel (0) target = $region21
  $region20: #{dilated_conv_encoder_forward.22} parent=0 // pred_region
    _
  $region21: #{dilated_conv_encoder_forward.22} parent=0 // pred_fallthru
    _
  // Predicated region
  $region22: #{dilated_conv_encoder_forward.22} parent=0 // pred_check
    _
  $region23: #{dilated_conv_encoder_forward.22} parent=0 // pred_check_branch
    %57 = sbr.rel (0) target = $region25
  $region24: #{dilated_conv_encoder_forward.22} parent=0 // pred_region
    _
  $region25: #{dilated_conv_encoder_forward.22} parent=0 // pred_fallthru
    _

// kernel: dilated_conv_encoder_forward.35
$region0: #{dilated_conv_encoder_forward.35}
  #allocation0 [shape = 'u32[]', space=smem, size = 0x4, offset = 0x4, fixed_abs, tag = 'smem constant byte address 0x4 - core index']
  #allocation1 [shape = 'u32[72,128]{1,0:T(1,128)}', space=vmem, size = 0x9000, scoped, tag = 'internal scratch']
  %s0 = inlined_call_operand.vmem [shape: bf16[32,96], index: 0, kind: input, shape index: {}]
  %s1 = inlined_call_operand.vmem [shape: bf16[96,32], index: 1, kind: input, shape index: {}]
  %s2 = inlined_call_operand.vmem [shape: f32[1,32], index: 2, kind: input, shape index: {}]
  %s3 = inlined_call_operand.hbm [shape: f32[32,32], index: 3, kind: output, shape index: {}]
  %s4 = sld [smem:[#allocation0]]
  $region22: #{dilated_conv_encoder_forward.35} parent=0
    _
  %s6 = ssub.s32 1, %s4
  %s7 = scalar_select 0, %s6, %s4
  $region1: #{dilated_conv_encoder_forward.35} parent=0
    #allocation2 [shape = 'u8[16384]{0}', space=vmem, size = 0x4000, scoped, tag = 'output window, operand 0, single buffered']
    #allocation3 [shape = 's32[1]{0}', space=sflag, size = 0x4, scoped, tag = 'scoped memory for dilated_conv_encoder_forward.35']
    %8 = vsyncpa [#allocation3], 0
    // Predicated region
    $region2: #{dilated_conv_encoder_forward.35} parent=1 // pred_check
      _
    $region3: #{dilated_conv_encoder_forward.35} parent=1 // pred_check_branch
      %10 = sbr.rel (0) target = $region5
    $region4: #{dilated_conv_encoder_forward.35} parent=1 // pred_region
      _
    $region5: #{dilated_conv_encoder_forward.35} parent=1 // pred_fallthru
      _
    // Predicated region
    $region6: #{dilated_conv_encoder_forward.35} parent=1 // pred_check
      _
    $region7: #{dilated_conv_encoder_forward.35} parent=1 // pred_check_branch
      %12 = sbr.rel (0) target = $region9
    $region8: #{dilated_conv_encoder_forward.35} parent=1 // pred_region
      _
    $region9: #{dilated_conv_encoder_forward.35} parent=1 // pred_fallthru
      _
    // Predicated region
    $region10: #{dilated_conv_encoder_forward.35} parent=1 // pred_check
      _
    $region11: #{dilated_conv_encoder_forward.35} parent=1 // pred_check_branch
      %14 = sbr.rel (0) target = $region13
    $region12: #{dilated_conv_encoder_forward.35} parent=1 // pred_region
      _
    $region13: #{dilated_conv_encoder_forward.35} parent=1 // pred_fallthru
      _
    %v16 = vld [vmem:[%s0] sm:$0xf]
    %v17 = vld [vmem:[%s0 + $0x4] sm:$0xf]
    %v18 = vld [vmem:[%s0 + $0x8] sm:$0xf]
    %v19 = vld [vmem:[%s0 + $0xc] sm:$0xf]
    %v20 = vld [vmem:[%s1] sm:$0xf]
    %v21 = vld [vmem:[%s1 + $0x4] sm:$0xf]
    %v22 = vld [vmem:[%s1 + $0x8] sm:$0xf]
    %v23 = vld [vmem:[%s1 + $0xc] sm:$0xf]
    %v24 = vld [vmem:[%s1 + $0x10] sm:$0xf]
    %v25 = vld [vmem:[%s1 + $0x14] sm:$0xf]
    %v26 = vld [vmem:[%s1 + $0x18] sm:$0xf]
    %v27 = vld [vmem:[%s1 + $0x1c] sm:$0xf]
    %v28 = vld [vmem:[%s1 + $0x20] sm:$0xf]
    %v29 = vld [vmem:[%s1 + $0x24] sm:$0xf]
    %v30 = vld [vmem:[%s1 + $0x28] sm:$0xf]
    %v31 = vld [vmem:[%s1 + $0x2c] sm:$0xf]
    %v32 = vld [vmem:[%s2] sm:$0x1]
    %v34 = vperm.slane %v32, 0
    %v40 = vunpack.c.l.b16 %v16
    %v41 = vunpack.c.l.b16 %v17
    %v42 = vunpack.c.l.b16 %v18
    %v43 = vunpack.c.l.b16 %v19
    %v44 = vpack.c.b16 %v41, %v40
    %v45 = vpack.c.b16 %v43, %v42
    %v58 = vunpack.c.l.b16 %v20
    %v59 = vunpack.c.l.b16 %v21
    %v60 = vunpack.c.l.b16 %v22
    %v61 = vunpack.c.l.b16 %v23
    %v62 = vunpack.c.l.b16 %v24
    %v63 = vunpack.c.l.b16 %v25
    %v64 = vunpack.c.l.b16 %v26
    %v65 = vunpack.c.l.b16 %v27
    %v66 = vunpack.c.l.b16 %v28
    %v67 = vunpack.c.l.b16 %v29
    %v68 = vunpack.c.l.b16 %v30
    %v69 = vunpack.c.l.b16 %v31
    %v70 = vpack.c.b16 %v59, %v58
    %v71 = vpack.c.b16 %v61, %v60
    %v72 = vpack.c.b16 %v63, %v62
    %v73 = vpack.c.b16 %v65, %v64
    %v74 = vpack.c.b16 %v67, %v66
    %v75 = vpack.c.b16 %v69, %v68
    %vm82 = vcmask 785408
    %v84 = vsel %vm82, %v44, 0
    %v87 = vsel %vm82, %v45, 0
    %89 = vmatpush.bf16.msra.mxu0 0
    %90 = vmatpush.bf16.msra.mxu0 0
    %91 = vmatpush.bf16.msra.mxu0 %v75
    %92 = vmatpush.bf16.msra.mxu0 %v74
    %93 = vmatpush.bf16.msra.mxu0 %v73
    %94 = vmatpush.bf16.msra.mxu0 %v72
    %95 = vmatpush.bf16.msra.mxu0 %v71
    %96 = vmatpush.bf16.msra.mxu0 %v70
    %97 = vmatmul.bf16.gmra.mxu0 %v84
    %v98 = vpop.f32.mrf.mxu0
    %v99 = vadd.f32 %v34, %v98
    %v100 = vpop.f32.mrf.mxu0
    %v101 = vadd.f32 %v34, %v100
    %102 = vmatmul.bf16.gmra.mxu0 %v87
    %v103 = vpop.f32.mrf.mxu0
    %v104 = vadd.f32 %v34, %v103
    %v105 = vpop.f32.mrf.mxu0
    %v106 = vadd.f32 %v34, %v105
    %107 = vdwg.mxu0
    %vm108 = vcmask 261120
    %109 = vst.msk [vmem:[#allocation2] sm:$0xff] %vm108, %v99
    %110 = vst.msk [vmem:[#allocation2 + $0x8] sm:$0xff] %vm108, %v101
    %111 = vst.msk [vmem:[#allocation2 + $0x10] sm:$0xff] %vm108, %v104
    %112 = vst.msk [vmem:[#allocation2 + $0x18] sm:$0xff] %vm108, %v106
    // Predicated region
    $region14: #{dilated_conv_encoder_forward.35} parent=1 // pred_check
      _
    $region15: #{dilated_conv_encoder_forward.35} parent=1 // pred_check_branch
      %114 = sbr.rel (0) target = $region17
    $region16: #{dilated_conv_encoder_forward.35} parent=1 // pred_region
      %116 = vsyncadd [#allocation3], 0
      %s117 = sshll.u32 [#allocation2], 4
      %s118 = int_to_ptr.vmem [resolvable:$true] %s117
      %s119 = sshll.u32 %s3, 4
      %s120 = int_to_ptr.hbm [resolvable:$true] %s119
      %125 = dma.vmem_to_hbm [thread:$0]  %s118, 512, %s120, [#allocation3], 128, 128, 8
    $region17: #{dilated_conv_encoder_forward.35} parent=1 // pred_fallthru
      _
    // Predicated region
    $region18: #{dilated_conv_encoder_forward.35} parent=1 // pred_check
      _
    $region19: #{dilated_conv_encoder_forward.35} parent=1 // pred_check_branch
      %127 = sbr.rel (0) target = $region21
    $region20: #{dilated_conv_encoder_forward.35} parent=1 // pred_region
      %129 = dma.done [#allocation3], 512
    $region21: #{dilated_conv_encoder_forward.35} parent=1 // pred_fallthru
      _
    %130 = vsyncpa [#allocation3], 1

</llo_original>
